<compile_context>
chip_gen: v7x
topology: tpu7x:2x2x1
jax: 0.10.0
libtpu: 0.0.40
codegen_flags: <defaults>
</compile_context>

<pallas_src>
import jax
import jax.numpy as jnp
from jax.experimental import pallas as pl
from jax.experimental.pallas import tpu as pltpu


def _make_partial_kernel(tm, c, chunk, valid_rows, need_mask):
    """Kernel: reduce one (tm, c) block of (x-y)^2 into an (8, c) partial."""
    n_chunks = tm // chunk  # static

    def kernel(x_ref, y_ref, out_ref):
        row0 = pl.program_id(0) * tm  # global row offset of this block

        def body(s, acc):
            start = pl.multiple_of(s * chunk, chunk)
            xs = x_ref[pl.ds(start, chunk), :].astype(jnp.float32)
            ys = y_ref[pl.ds(start, chunk), :].astype(jnp.float32)
            d = xs - ys
            if need_mask:
                # Zero out rows past the end of the (un-padded) input slab.
                # Pallas does not zero-fill partial blocks, so this is a
                # correctness requirement on the last grid step; it is cheap
                # VPU work and the kernel is HBM-bound anyway.
                rid = row0 + start + jax.lax.broadcasted_iota(
                    jnp.int32, (chunk, 1), 0)
                d = jnp.where(rid < valid_rows, d, 0.0)
            sq = d * d
            # (chunk, c) -> (chunk//8, 8, c) only regroups the sublane axis
            # (layout preserving); the axis-0 sum is a pure VPU vreg-add tree.
            return acc + jnp.sum(sq.reshape(chunk // 8, 8, c), axis=0)

        acc = jax.lax.fori_loop(0, n_chunks, body,
                                jnp.zeros((8, c), jnp.float32))
        out_ref[...] = acc

    return kernel


def l22_loss(x, y, *, target_block_bytes=None):
    """loss = (|x - y|**2).sum(-1).mean() == sum((x-y)^2) / prod(shape[:-1])."""
    assert x.shape == y.shape, (x.shape, y.shape)

    shape = x.shape
    total = 1
    for s in shape:
        total *= s
    m = 1
    for s in shape[:-1]:
        m *= s

    # ---- lane width: prefer a multiple of 128 that divides total ----------
    c = 128
    for cand in (512, 256, 128):
        if total % cand == 0 and total // cand >= 8:
            c = cand
            break
    rows = total // c
    rem = total - rows * c

    flat_x = x.reshape(-1)
    flat_y = y.reshape(-1)

    # Tiny-input fallback: not enough rows for an (8, 128)-tiled block.
    if rows < 8:
        d = flat_x.astype(jnp.float32) - flat_y.astype(jnp.float32)
        return jnp.sum(d * d) / jnp.float32(m)

    # Sub-c remainder (rare; < c elements): handle in plain XLA so the main
    # slab reshape stays a no-copy bitcast in the common (rem == 0) case.
    tail_sum = jnp.float32(0.0)
    if rem:
        dt = (flat_x[rows * c:].astype(jnp.float32)
              - flat_y[rows * c:].astype(jnp.float32))
        tail_sum = jnp.sum(dt * dt)
        flat_x = flat_x[: rows * c]
        flat_y = flat_y[: rows * c]

    x2 = flat_x.reshape(rows, c)  # no-copy bitcast when rem == 0
    y2 = flat_y.reshape(rows, c)

    # ---- generation-aware sizing ------------------------------------------
    itemsize = jnp.dtype(x.dtype).itemsize
    try:
        vmem_cap = int(pltpu.get_tpu_info().vmem_capacity_bytes)
    except Exception:
        vmem_cap = 64 << 20  # conservative (v7x-sized) fallback
    if target_block_bytes is None:
        # ~4 MiB input blocks on 64-MiB-VMEM chips (v7x), ~8 MiB otherwise.
        target_block_bytes = (4 << 20) if vmem_cap <= (64 << 20) else (8 << 20)

    # Inner accumulation chunk: ~32K elements (bounds the in-kernel f32
    # temporaries to a few hundred KiB regardless of block size).
    chunk = max(8, min((32768 // c) // 8 * 8, (rows // 8) * 8))

    # Row tile: multiple of `chunk`, sized by target_block_bytes, but capped
    # at ~half the rows so the "parallel" grid axis has >= 2 steps whenever
    # possible (lets both v7x TensorCores participate).
    max_rows_by_bytes = (target_block_bytes // (c * itemsize)) // chunk * chunk
    half_rows = pl.cdiv(pl.cdiv(rows, 2), chunk) * chunk
    tm = max(chunk, min(max_rows_by_bytes, half_rows))
    num_tiles = pl.cdiv(rows, tm)
    need_mask = (rows % tm) != 0

    # ---- VMEM budget --------------------------------------------------------
    block_bytes = tm * c * itemsize          # one pipelined input block
    out_block_bytes = 8 * c * 4
    temp_bytes = 6 * chunk * c * 4           # per-chunk f32 transients
    vmem_limit = (2 * 2 * block_bytes        # 2 inputs x double-buffered
                  + 2 * out_block_bytes
                  + temp_bytes
                  + (2 << 20))               # headroom
    vmem_limit = min(max(vmem_limit, 16 << 20), int(0.75 * vmem_cap))

    partials = pl.pallas_call(
        _make_partial_kernel(tm, c, chunk, rows, need_mask),
        out_shape=jax.ShapeDtypeStruct((num_tiles * 8, c), jnp.float32),
        grid_spec=pltpu.PrefetchScalarGridSpec(
            num_scalar_prefetch=0,
            grid=(num_tiles,),
            in_specs=[
                pl.BlockSpec((tm, c), lambda i: (i, 0)),
                pl.BlockSpec((tm, c), lambda i: (i, 0)),
            ],
            out_specs=pl.BlockSpec((8, c), lambda i: (i, 0)),
        ),
        compiler_params=pltpu.CompilerParams(
            dimension_semantics=("parallel",),  # megacore-shardable on v7x
            vmem_limit_bytes=vmem_limit,
        ),
    )(x2, y2)

    # One tiny final reduce + the mean, done in XLA outside the kernel.
    return (jnp.sum(partials) + tail_sum) / jnp.float32(m)


def l22_loss_ref(x, y):
    x = x.astype(jnp.float32)
    y = y.astype(jnp.float32)
    return jnp.mean(jnp.sum(jnp.abs(x - y) ** 2, axis=-1))


if __name__ == "__main__":
    key = jax.random.PRNGKey(0)
    kx, ky = jax.random.split(key)

    # Small NCHW-style tensor pair: (B, C, H, W).
    shape = (2, 4, 16, 16)
    x = jax.random.normal(kx, shape, dtype=jnp.float32)
    y = jax.random.normal(ky, shape, dtype=jnp.float32)

    out = jax.jit(l22_loss)(x, y)
    jax.block_until_ready(out)

    ref = l22_loss_ref(x, y)
    assert jnp.allclose(out, ref, rtol=1e-5, atol=1e-5), (out, ref)

    print("KERNEL_OK")
</pallas_src>

<mosaic_0001>
module attributes {stable_mosaic.version = 11 : i64} {
  func.func @kernel(%arg0: i32, %arg1: memref<8x256xf32, #tpu.memory_space<vmem>>, %arg2: memref<8x256xf32, #tpu.memory_space<vmem>>, %arg3: memref<8x256xf32, #tpu.memory_space<vmem>>) attributes {dimension_semantics = [#tpu.dimension_semantics<parallel>], iteration_bounds = array<i64: 1>, scalar_prefetch = 0 : i64, scratch_operands = 0 : i64, tpu.core_type = #tpu.core_type<tc>, window_params = [{transform_indices = @transform_0, window_bounds = array<i64: 8, 256>}, {transform_indices = @transform_1, window_bounds = array<i64: 8, 256>}, {transform_indices = @transform_2, window_bounds = array<i64: 8, 256>}]} {
    %cst = arith.constant 0.000000e+00 : f32
    %0 = vector.broadcast %cst : f32 to vector<8x256xf32>
    %c0_i32 = arith.constant 0 : i32
    %c8_i32 = arith.constant 8 : i32
    %1 = arith.muli %c0_i32, %c8_i32 : i32
    %2 = tpu.assume_multiple %1, 8 : i32
    %3 = arith.index_cast %2 : i32 to index
    %c0 = arith.constant 0 : index
    %4 = vector.load %arg1[%3, %c0] : memref<8x256xf32, #tpu.memory_space<vmem>>, vector<8x256xf32>
    %5 = arith.index_cast %2 : i32 to index
    %c0_0 = arith.constant 0 : index
    %6 = vector.load %arg2[%5, %c0_0] : memref<8x256xf32, #tpu.memory_space<vmem>>, vector<8x256xf32>
    %7 = arith.subf %4, %6 : vector<8x256xf32>
    %8 = arith.mulf %7, %7 : vector<8x256xf32>
    %9 = vector.shape_cast %8 : vector<8x256xf32> to vector<1x8x256xf32>
    %cst_1 = arith.constant dense<0.000000e+00> : vector<8x256xf32>
    %10 = vector.multi_reduction <add>, %9, %cst_1 [0] : vector<1x8x256xf32> to vector<8x256xf32>
    %11 = arith.addf %0, %10 : vector<8x256xf32>
    %c1_i32 = arith.constant 1 : i32
    %c0_2 = arith.constant 0 : index
    %c0_3 = arith.constant 0 : index
    %12 = vector.load %arg3[%c0_2, %c0_3] : memref<8x256xf32, #tpu.memory_space<vmem>>, vector<8x256xf32>
    tpu.vector_store %arg3[%c0_2, %c0_3], %11 {strides = array<i32>} : memref<8x256xf32, #tpu.memory_space<vmem>>, vector<8x256xf32>,
    return
  }
  func.func @transform_0(%arg0: i32) -> (i32, i32) {
    %c0_i32 = arith.constant 0 : i32
    %c0_i32_0 = arith.constant 0 : i32
    return %arg0, %c0_i32 : i32, i32
  }
  func.func @transform_1(%arg0: i32) -> (i32, i32) {
    %c0_i32 = arith.constant 0 : i32
    %c0_i32_0 = arith.constant 0 : i32
    return %arg0, %c0_i32 : i32, i32
  }
  func.func @transform_2(%arg0: i32) -> (i32, i32) {
    %c0_i32 = arith.constant 0 : i32
    %c0_i32_0 = arith.constant 0 : i32
    return %arg0, %c0_i32 : i32, i32
  }
}

</mosaic_0001>

<llo_original>
// kernel: l22_loss.1
$region0: #{l22_loss.1}
  #allocation0 [shape = 'u32[]', space=smem, size = 0x4, offset = 0x4, fixed_abs, tag = 'smem constant byte address 0x4 - core index']
  #allocation1 [shape = 'u32[144,128]{1,0:T(1,128)}', space=vmem, size = 0x12000, scoped, tag = 'internal scratch']
  %s0 = inlined_call_operand.vmem [shape: f32[8,256], index: 0, kind: input, shape index: {}]
  %s1 = inlined_call_operand.vmem [shape: f32[8,256], index: 1, kind: input, shape index: {}]
  %s2 = inlined_call_operand.vmem [shape: f32[8,256], index: 2, kind: output, shape index: {}]
  %s3 = sld [smem:[#allocation0]]
  $region18: #{l22_loss.1} parent=0
    _
  %s5 = ssub.s32 1, %s3
  %s6 = scalar_select 0, %s5, %s3
  // Predicated region
  $region2: #{l22_loss.1} parent=0 // pred_check
    _
  $region3: #{l22_loss.1} parent=0 // pred_check_branch
    %8 = sbr.rel (0) target = $region5
  $region4: #{l22_loss.1} parent=0 // pred_region
    _
  $region5: #{l22_loss.1} parent=0 // pred_fallthru
    _
  // Predicated region
  $region6: #{l22_loss.1} parent=0 // pred_check
    _
  $region7: #{l22_loss.1} parent=0 // pred_check_branch
    %10 = sbr.rel (0) target = $region9
  $region8: #{l22_loss.1} parent=0 // pred_region
    _
  $region9: #{l22_loss.1} parent=0 // pred_fallthru
    _
  %s11 = smul.u32 0, 2
  %s12 = smul.addr %s11, 8
  %s13 = scalar_lea.vmem %s0, %s12
  %v14 = vld [vmem:[%s13] sm:$0xff]
  %v15 = vld [vmem:[%s13 + $0x8] sm:$0xff]
  %s16 = smul.addr %s11, 8
  %s17 = scalar_lea.vmem %s1, %s16
  %v18 = vld [vmem:[%s17] sm:$0xff]
  %v19 = vld [vmem:[%s17 + $0x8] sm:$0xff]
  %v20 = vsub.f32 %v14, %v18
  %v21 = vsub.f32 %v15, %v19
  %v22 = vmul.f32 %v20, %v20
  %v23 = vmul.f32 %v21, %v21
  %v24 = vadd.f32 %v22, 0.0
  %v25 = vadd.f32 %v23, 0.0
  %v26 = vadd.f32 %v24, 0.0
  %v27 = vadd.f32 %v25, 0.0
  %28 = vst [vmem:[%s2] sm:$0xff] %v26
  %29 = vst [vmem:[%s2 + $0x8] sm:$0xff] %v27
  // Predicated region
  $region10: #{l22_loss.1} parent=0 // pred_check
    _
  $region11: #{l22_loss.1} parent=0 // pred_check_branch
    %31 = sbr.rel (0) target = $region13
  $region12: #{l22_loss.1} parent=0 // pred_region
    _
  $region13: #{l22_loss.1} parent=0 // pred_fallthru
    _
  // Predicated region
  $region14: #{l22_loss.1} parent=0 // pred_check
    _
  $region15: #{l22_loss.1} parent=0 // pred_check_branch
    %33 = sbr.rel (0) target = $region17
  $region16: #{l22_loss.1} parent=0 // pred_region
    _
  $region17: #{l22_loss.1} parent=0 // pred_fallthru
    _

</llo_original>
